<compile_context>
chip_gen: v6e
topology: v6e:2x2x1
jax: 0.10.0
libtpu: 0.0.40
codegen_flags: <defaults>
</compile_context>

<pallas_src>
import functools

import jax
import jax.numpy as jnp
from jax.experimental import pallas as pl
from jax.experimental.pallas import tpu as pltpu


def _round_up(x, m):
    return (x + m - 1) // m * m


def _self_attention_kernel(x_ref, w1_ref, b1_ref, w2_ref, o_ref, *,
                           s_valid, matmul_dtype):
    b_blk, s, h = x_ref.shape

    # Fold batch into the matmul M dimension.  S is padded to the sublane tile
    # in the wrapper, so this is a pure leading-dim reshape (no relayout).
    xm = x_ref[...].reshape(b_blk * s, h)

    # Linear -> ReLU -> Linear on the MXU, f32 accumulation.  Operands cast to
    # bf16 when the input is f32 for full MXU throughput.
    y = jnp.dot(xm.astype(matmul_dtype), w1_ref[...].astype(matmul_dtype),
                preferred_element_type=jnp.float32)            # (B_blk*S, H)
    y = jnp.maximum(y + b1_ref[...].astype(jnp.float32), 0.0)
    e = jnp.dot(y.astype(matmul_dtype), w2_ref[...].astype(matmul_dtype),
                preferred_element_type=jnp.float32)            # (B_blk*S, H)
    # NOTE: b2 intentionally omitted — softmax over the sequence axis is
    # invariant to a per-channel constant added at every sequence position.

    e = e.reshape(b_blk, s, h)

    # Mask sequence padding (branch only emitted when the wrapper padded S).
    if s_valid < s:
        seq = jax.lax.broadcasted_iota(jnp.int32, (b_blk, s, h), 1)
        e = jnp.where(seq < s_valid, e, -jnp.inf)

    # Softmax over the sequence axis (PyTorch dim=1), per (batch, channel).
    m = jnp.max(e, axis=1, keepdims=True)                      # (B_blk, 1, H)
    p = jnp.exp(e - m)                                         # (B_blk, S, H)
    denom = jnp.sum(p, axis=1, keepdims=True)                  # (B_blk, 1, H)
    w = p * pl.reciprocal(denom, approx=True)                  # EUP vrcp

    # Re-read x from VMEM for the gate: keeps the x tile out of vregs across
    # the matmuls/softmax (the vld slots have slack; spills do not).
    x_gate = x_ref[...]
    if x_gate.dtype == jnp.float32:
        out = x_gate * w
    else:
        # bf16 gate on v6e/v7x (bf16 VPU) halves the vregs touched here.
        # TODO(synk): on v5e (no bf16 VALU) an f32 gate may be preferable.
        out = x_gate * w.astype(x_gate.dtype)
    o_ref[...] = out.astype(o_ref.dtype)


def _choose_batch_block(batch, s_pad, h_pad, in_itemsize, vmem_budget_bytes):
    """Pick a divisor of `batch` for the per-step batch tile."""
    def working_set_bytes(bb):
        tile = bb * s_pad * h_pad
        return (4 * tile * in_itemsize          # double-buffered x-in and out
                + 3 * tile * 4                  # f32 intermediates (y, e/p, w)
                + 4 * h_pad * h_pad * 4         # double-buffered W1^T, W2^T
                + 2 * h_pad * 4)                # double-buffered b1

    divisors = [d for d in range(1, batch + 1) if batch % d == 0]
    fitting = [d for d in divisors
               if working_set_bytes(d) <= vmem_budget_bytes] or [1]
    # Prefer >= 4 grid steps so the pipeline can overlap DMA with compute;
    # within that, the smallest tile with >= 512 flattened matmul rows.
    pipelined = [d for d in fitting if batch // d >= 4]
    pool = pipelined if pipelined else fitting
    big = [d for d in pool if d * s_pad >= 512]
    if big:
        return min(big) if pipelined else max(big)
    # Small problems (nothing reaches 512 rows): keep at least 2 grid steps
    # if the batch allows it so there is still some pipelining.
    multi = [d for d in pool if batch // d >= 2]
    return max(multi) if multi else max(pool)


def self_attention(x, w1_t, b1, w2_t, b2=None, *, batch_block=None,
                   matmul_dtype=None):
    """ESIM SelfAttention forward.

    x    : (B, S, H) encoder outputs.
    w*_t : (H, H) PyTorch Linear weights, pre-transposed (y = x @ W^T + b).
    b1   : (H,) or (1, H) first bias.  b2 is accepted for API parity but is
           unused — it cancels exactly in the softmax over the sequence axis.
    """
    del b2
    B, S, H = x.shape
    itemsize = jnp.dtype(x.dtype).itemsize

    if matmul_dtype is None:
        # MXU is a bf16 array on v5e/v6e/v7x: bf16 operands + f32 accumulation.
        matmul_dtype = jnp.bfloat16 if x.dtype == jnp.float32 else x.dtype

    # Lane-dense layout: pad H to a multiple of 128 (zero weights/bias) and S
    # to the sublane tile (padded rows get -inf energy in the kernel).
    sublane = 32 // itemsize          # 8 for f32, 16 for bf16, 32 for int8
    H_pad = _round_up(H, 128)
    S_pad = _round_up(S, sublane)

    b1 = jnp.asarray(b1).reshape(1, -1)
    if H_pad != H:
        x = jnp.pad(x, ((0, 0), (0, 0), (0, H_pad - H)))
        w1_t = jnp.pad(w1_t, ((0, H_pad - H), (0, H_pad - H)))
        w2_t = jnp.pad(w2_t, ((0, H_pad - H), (0, H_pad - H)))
        b1 = jnp.pad(b1, ((0, 0), (0, H_pad - H)))
    if S_pad != S:
        x = jnp.pad(x, ((0, 0), (0, S_pad - S), (0, 0)))

    # Explicit VMEM budget (scoped defaults are far too small for good tiles).
    try:
        vmem_capacity = pltpu.get_tpu_info().vmem_capacity_bytes
    except Exception:
        vmem_capacity = 64 * 1024 * 1024      # conservative (v7x per-core VMEM)
    vmem_budget = int(vmem_capacity * 0.75)   # ~96 MiB v5e/v6e, ~48 MiB v7x

    if batch_block is None:
        batch_block = _choose_batch_block(B, S_pad, H_pad, itemsize, vmem_budget)
    assert B % batch_block == 0, "batch_block must divide the batch size"
    grid = (B // batch_block,)

    kernel = functools.partial(_self_attention_kernel,
                               s_valid=S, matmul_dtype=matmul_dtype)

    out = pl.pallas_call(
        kernel,
        out_shape=jax.ShapeDtypeStruct((B, S_pad, H_pad), x.dtype),
        grid_spec=pltpu.PrefetchScalarGridSpec(
            num_scalar_prefetch=0,
            grid=grid,
            in_specs=[
                pl.BlockSpec((batch_block, S_pad, H_pad), lambda b: (b, 0, 0)),
                # TODO(synk): at large H on v7x, single-buffer the constant-
                # index weight/bias specs (pipeline_mode=pl.Buffered(1)) or
                # stage them once into VMEM scratch to reclaim VMEM for a
                # larger batch_block.
                pl.BlockSpec((H_pad, H_pad), lambda b: (0, 0)),   # W1^T
                pl.BlockSpec((1, H_pad), lambda b: (0, 0)),       # b1
                pl.BlockSpec((H_pad, H_pad), lambda b: (0, 0)),   # W2^T
            ],
            out_specs=pl.BlockSpec((batch_block, S_pad, H_pad),
                                   lambda b: (b, 0, 0)),
        ),
        compiler_params=pltpu.CompilerParams(
            dimension_semantics=("parallel",),   # shard batch across v7x's 2 TCs
            vmem_limit_bytes=vmem_budget,
        ),
    )(x, w1_t, b1, w2_t)

    if H_pad != H or S_pad != S:
        out = out[:, :S, :H]
    return out


def reference(x, w1_t, b1, w2_t, b2):
    """Pure-JAX reference of the full PyTorch math (including b2)."""
    h = jnp.maximum(jnp.dot(x, w1_t) + jnp.asarray(b1).reshape(1, -1), 0.0)
    e = jnp.dot(h, w2_t) + jnp.asarray(b2).reshape(1, -1)
    w = jax.nn.softmax(e, axis=1)      # softmax over the sequence dim
    return x * w


if __name__ == "__main__":
    B, S, H = 2, 8, 32   # batch, sequence, hidden_dim

    key = jax.random.PRNGKey(0)
    kx, kw1, kb1, kw2, kb2 = jax.random.split(key, 5)

    x = jax.random.normal(kx, (B, S, H), dtype=jnp.float32)

    # nn.Linear(hidden_dim, hidden_dim) x2, stored pre-transposed (w*_t = W^T).
    bound = 1.0 / (H ** 0.5)
    w1_t = jax.random.uniform(kw1, (H, H), jnp.float32, -bound, bound)
    b1 = jax.random.uniform(kb1, (1, H), jnp.float32, -bound, bound)
    w2_t = jax.random.uniform(kw2, (H, H), jnp.float32, -bound, bound)
    b2 = jax.random.uniform(kb2, (1, H), jnp.float32, -bound, bound)

    ref = reference(x, w1_t, b1, w2_t, b2)

    # Exact-math check: f32 matmul operands; only the EUP approximate
    # reciprocal (~2^-12 relative) differs from the pure-JAX math.
    out_f32 = jax.block_until_ready(
        self_attention(x, w1_t, b1, w2_t, b2, matmul_dtype=jnp.float32))
    assert out_f32.shape == (B, S, H)
    assert jnp.allclose(out_f32, ref, atol=2e-3, rtol=2e-3), "f32 path mismatch"

    # Fast-path check: default bf16 matmul operands with f32 accumulation.
    out = jax.block_until_ready(self_attention(x, w1_t, b1, w2_t, b2))
    assert out.shape == (B, S, H)
    assert jnp.allclose(out, ref, atol=3e-2, rtol=3e-2), "bf16 path mismatch"

    print("KERNEL_OK")
</pallas_src>

<mosaic_0001>
module attributes {stable_mosaic.version = 11 : i64} {
  func.func @_self_attention_kernel(%arg0: i32, %arg1: memref<1x8x128xf32, #tpu.memory_space<vmem>>, %arg2: memref<128x128xf32, #tpu.memory_space<vmem>>, %arg3: memref<1x128xf32, #tpu.memory_space<vmem>>, %arg4: memref<128x128xf32, #tpu.memory_space<vmem>>, %arg5: memref<1x8x128xf32, #tpu.memory_space<vmem>>) attributes {dimension_semantics = [#tpu.dimension_semantics<parallel>], iteration_bounds = array<i64: 2>, scalar_prefetch = 0 : i64, scratch_operands = 0 : i64, tpu.core_type = #tpu.core_type<tc>, window_params = [{transform_indices = @transform_0, window_bounds = array<i64: 1, 8, 128>}, {pipeline_mode = #tpu.pipeline_mode<synchronous>, transform_indices = @transform_1, window_bounds = array<i64: 128, 128>}, {pipeline_mode = #tpu.pipeline_mode<synchronous>, transform_indices = @transform_2, window_bounds = array<i64: 1, 128>}, {pipeline_mode = #tpu.pipeline_mode<synchronous>, transform_indices = @transform_3, window_bounds = array<i64: 128, 128>}, {transform_indices = @transform_4, window_bounds = array<i64: 1, 8, 128>}]} {
    %c0 = arith.constant 0 : index
    %c0_0 = arith.constant 0 : index
    %c0_1 = arith.constant 0 : index
    %0 = vector.load %arg1[%c0, %c0_0, %c0_1] : memref<1x8x128xf32, #tpu.memory_space<vmem>>, vector<1x8x128xf32>
    %1 = vector.shape_cast %0 : vector<1x8x128xf32> to vector<8x128xf32>
    %c0_2 = arith.constant 0 : index
    %c0_3 = arith.constant 0 : index
    %2 = vector.load %arg2[%c0_2, %c0_3] : memref<128x128xf32, #tpu.memory_space<vmem>>, vector<128x128xf32>
    %cst = arith.constant dense<0.000000e+00> : vector<8x128xf32>
    %3 = tpu.matmul %1, %2, %cst {dimension_numbers = #tpu.dot_dimension_numbers<[1], [0], [0], [1], [0, 0, 1, 1], [], []>} : vector<8x128xf32>, vector<128x128xf32>, vector<8x128xf32> -> vector<8x128xf32>
    %c0_4 = arith.constant 0 : index
    %c0_5 = arith.constant 0 : index
    %4 = vector.load %arg3[%c0_4, %c0_5] : memref<1x128xf32, #tpu.memory_space<vmem>>, vector<1x128xf32>
    %5 = vector.broadcast %4 : vector<1x128xf32> to vector<8x128xf32>
    %6 = arith.addf %3, %5 : vector<8x128xf32>
    %cst_6 = arith.constant 0.000000e+00 : f32
    %7 = vector.broadcast %cst_6 : f32 to vector<8x128xf32>
    %8 = arith.maximumf %6, %7 : vector<8x128xf32>
    %c0_7 = arith.constant 0 : index
    %c0_8 = arith.constant 0 : index
    %9 = vector.load %arg4[%c0_7, %c0_8] : memref<128x128xf32, #tpu.memory_space<vmem>>, vector<128x128xf32>
    %cst_9 = arith.constant dense<0.000000e+00> : vector<8x128xf32>
    %10 = tpu.matmul %8, %9, %cst_9 {dimension_numbers = #tpu.dot_dimension_numbers<[1], [0], [0], [1], [0, 0, 1, 1], [], []>} : vector<8x128xf32>, vector<128x128xf32>, vector<8x128xf32> -> vector<8x128xf32>
    %11 = vector.shape_cast %10 : vector<8x128xf32> to vector<1x8x128xf32>
    %cst_10 = arith.constant dense<0xFF800000> : vector<1x128xf32>
    %12 = vector.multi_reduction <maximumf>, %11, %cst_10 [1] : vector<1x8x128xf32> to vector<1x128xf32>
    %13 = vector.shape_cast %12 : vector<1x128xf32> to vector<1x1x128xf32>
    %14 = vector.broadcast %13 : vector<1x1x128xf32> to vector<1x8x128xf32>
    %15 = arith.subf %11, %14 : vector<1x8x128xf32>
    %16 = math.exp %15 : vector<1x8x128xf32>
    %cst_11 = arith.constant dense<0.000000e+00> : vector<1x128xf32>
    %17 = vector.multi_reduction <add>, %16, %cst_11 [1] : vector<1x8x128xf32> to vector<1x128xf32>
    %18 = vector.shape_cast %17 : vector<1x128xf32> to vector<1x1x128xf32>
    %19 = tpu.reciprocal %18 {approx = true} : vector<1x1x128xf32> -> vector<1x1x128xf32>
    %20 = vector.broadcast %19 : vector<1x1x128xf32> to vector<1x8x128xf32>
    %21 = arith.mulf %16, %20 : vector<1x8x128xf32>
    %c0_12 = arith.constant 0 : index
    %c0_13 = arith.constant 0 : index
    %c0_14 = arith.constant 0 : index
    %22 = vector.load %arg1[%c0_12, %c0_13, %c0_14] : memref<1x8x128xf32, #tpu.memory_space<vmem>>, vector<1x8x128xf32>
    %23 = arith.mulf %22, %21 : vector<1x8x128xf32>
    %c0_15 = arith.constant 0 : index
    %c0_16 = arith.constant 0 : index
    %c0_17 = arith.constant 0 : index
    %24 = vector.load %arg5[%c0_15, %c0_16, %c0_17] : memref<1x8x128xf32, #tpu.memory_space<vmem>>, vector<1x8x128xf32>
    tpu.vector_store %arg5[%c0_15, %c0_16, %c0_17], %23 {strides = array<i32>} : memref<1x8x128xf32, #tpu.memory_space<vmem>>, vector<1x8x128xf32>,
    return
  }
  func.func @transform_0(%arg0: i32) -> (i32, i32, i32) {
    %c0_i32 = arith.constant 0 : i32
    %c0_i32_0 = arith.constant 0 : i32
    %c0_i32_1 = arith.constant 0 : i32
    return %arg0, %c0_i32, %c0_i32_0 : i32, i32, i32
  }
  func.func @transform_1(%arg0: i32) -> (i32, i32) {
    %c0_i32 = arith.constant 0 : i32
    %c0_i32_0 = arith.constant 0 : i32
    %c0_i32_1 = arith.constant 0 : i32
    return %c0_i32, %c0_i32_0 : i32, i32
  }
  func.func @transform_2(%arg0: i32) -> (i32, i32) {
    %c0_i32 = arith.constant 0 : i32
    %c0_i32_0 = arith.constant 0 : i32
    %c0_i32_1 = arith.constant 0 : i32
    return %c0_i32, %c0_i32_0 : i32, i32
  }
  func.func @transform_3(%arg0: i32) -> (i32, i32) {
    %c0_i32 = arith.constant 0 : i32
    %c0_i32_0 = arith.constant 0 : i32
    %c0_i32_1 = arith.constant 0 : i32
    return %c0_i32, %c0_i32_0 : i32, i32
  }
  func.func @transform_4(%arg0: i32) -> (i32, i32, i32) {
    %c0_i32 = arith.constant 0 : i32
    %c0_i32_0 = arith.constant 0 : i32
    %c0_i32_1 = arith.constant 0 : i32
    return %arg0, %c0_i32, %c0_i32_0 : i32, i32, i32
  }
}

</mosaic_0001>

<llo_original>
// kernel: tpu_custom_call.1
$region0: #{tpu_custom_call.1}
  #allocation0 [shape = 'u32[]', space=smem, size = 0x4, offset = 0x4, fixed_abs, tag = 'smem constant byte address 0x4 - core index']
  #allocation1 [shape = 'u32[144,128]{1,0:T(1,128)}', space=vmem, size = 0x12000, scoped, tag = 'internal scratch']
  %s0 = inlined_call_operand.hbm [shape: f32[2,8,128], index: 0, kind: input, shape index: {}]
  %s1 = inlined_call_operand.hbm [shape: f32[128,128], index: 1, kind: input, shape index: {}]
  %s2 = inlined_call_operand.vmem [shape: f32[1,128], index: 2, kind: input, shape index: {}]
  %s3 = inlined_call_operand.hbm [shape: f32[128,128], index: 3, kind: input, shape index: {}]
  %s4 = inlined_call_operand.hbm [shape: f32[2,8,128], index: 4, kind: output, shape index: {}]
  %s5 = sld [smem:[#allocation0]]
  $region61: #{tpu_custom_call.1} parent=0
    _
  %s7 = ssub.s32 1, %s5
  %s8 = scalar_select 0, %s7, %s5
  $region1: #{tpu_custom_call.1} parent=0
    #allocation2 [shape = 'u8[8192]{0}', space=vmem, size = 0x2000, scoped, tag = 'input window, operand 0']
    #allocation3 [shape = 's32[2]{0}', space=sflag, size = 0x8, scoped, tag = 'scoped memory for tpu_custom_call.1']
    #allocation4 [shape = 's32[2]{0}', space=sflag, size = 0x8, scoped, tag = 'scoped memory for tpu_custom_call.1']
    #allocation5 [shape = 'u8[65536]{0}', space=vmem, size = 0x10000, scoped, tag = 'input window, operand 1, single buffered']
    #allocation6 [shape = 's32[1]{0}', space=sflag, size = 0x4, scoped, tag = 'scoped memory for tpu_custom_call.1']
    #allocation7 [shape = 'u8[65536]{0}', space=vmem, size = 0x10000, scoped, tag = 'input window, operand 3, single buffered']
    #allocation8 [shape = 'u8[8192]{0}', space=vmem, size = 0x2000, scoped, tag = 'output window, operand 0']
    %9 = vsyncpa [#allocation3], 0
    %s10 = scalar_lea.sflag [#allocation3], 1
    %11 = vsyncpa %s10, 0
    %12 = vsyncpa [#allocation6], 0
    %13 = vsyncpa [#allocation4], 0
    %s14 = scalar_lea.sflag [#allocation4], 1
    %15 = vsyncpa %s14, 0
    loop: start=0, step=1, limit=4
    $region2: #{tpu_custom_call.1} parent=1 // loop_pre_header
      _
    $region3: #{tpu_custom_call.1} parent=1 // loop_header
      %s17 = sphi 0, %s21
      %p18 = scmp.ge.s32.totalorder %s17, 4
      %s27 = sphi 0, %s29
      %s30 = sphi 0, %s27
      %s31 = sphi 0, %s30
      %s47 = sphi 0, %s31
      %s51 = sphi 0, %s51
      %s53 = sphi 0, %s51
      %s54 = sphi 0, %s53
      %s68 = sphi 0, %s54
      %s72 = sphi 0, %s72
      %s74 = sphi 0, %s72
      %s75 = sphi 0, %s74
      %s89 = sphi 0, %s75
      %s93 = sphi 0, %s93
      %s95 = sphi 0, %s93
      %s96 = sphi 0, %s95
      %s110 = sphi 0, %s96
      %s116 = sphi 0, %s118
      %s119 = sphi 0, %s116
      %s120 = sphi 0, %s119
      %s136 = sphi 0, %s120
    $region4: #{tpu_custom_call.1} parent=1 // loop_header_branch
      %20 = sbr.rel (%p18) target = $region8
    $region5: #{tpu_custom_call.1} parent=1 // loop_body
      %s22 = ssub.s32 %s17, 1
      %s23 = ssub.s32 %s17, 2
      %s24 = sadd.s32 %s17, 1
      %s25 = ssub.s32 %s17, %s24
      %p26 = scmp.eq.s32.totalorder %s25, 0
      %s28 = sadd.s32 %s27, 1
      %s29 = scalar_select %p26, %s27, %s28
      %p32 = pneg %p26
      %p33 = scmp.eq.s32.totalorder %s17, 1
      %p34 = por %p32, %p33
      %p35 = scmp.ne.s32.totalorder %s27, %s30
      %p36 = scmp.eq.s32.totalorder %s17, 0
      %p37 = por %p35, %p36
      %p38 = scmp.ne.s32.totalorder %s27, %s30
      %p39 = scmp.eq.s32.totalorder %s22, 1
      %p40 = por %p38, %p39
      %p41 = scmp.ne.s32.totalorder %s30, %s31
      %p42 = scmp.eq.s32.totalorder %s22, 0
      %p43 = por %p41, %p42
      %p44 = scmp.ne.s32.totalorder %s30, %s31
      %p45 = scmp.eq.s32.totalorder %s23, 1
      %p46 = por %p44, %p45
      %p48 = scmp.ne.s32.totalorder %s31, %s47
      %p49 = scmp.eq.s32.totalorder %s23, 0
      %p50 = por %p48, %p49
      %s52 = sadd.s32 %s51, 1
      %p55 = scmp.eq.s32.totalorder %s17, 1
      %p56 = scmp.ne.s32.totalorder %s51, %s53
      %p57 = scmp.eq.s32.totalorder %s17, 0
      %p58 = por %p56, %p57
      %p59 = scmp.ne.s32.totalorder %s51, %s53
      %p60 = scmp.eq.s32.totalorder %s22, 1
      %p61 = por %p59, %p60
      %p62 = scmp.ne.s32.totalorder %s53, %s54
      %p63 = scmp.eq.s32.totalorder %s22, 0
      %p64 = por %p62, %p63
      %p65 = scmp.ne.s32.totalorder %s53, %s54
      %p66 = scmp.eq.s32.totalorder %s23, 1
      %p67 = por %p65, %p66
      %p69 = scmp.ne.s32.totalorder %s54, %s68
      %p70 = scmp.eq.s32.totalorder %s23, 0
      %p71 = por %p69, %p70
      %s73 = sadd.s32 %s72, 1
      %p76 = scmp.eq.s32.totalorder %s17, 1
      %p77 = scmp.ne.s32.totalorder %s72, %s74
      %p78 = scmp.eq.s32.totalorder %s17, 0
      %p79 = por %p77, %p78
      %p80 = scmp.ne.s32.totalorder %s72, %s74
      %p81 = scmp.eq.s32.totalorder %s22, 1
      %p82 = por %p80, %p81
      %p83 = scmp.ne.s32.totalorder %s74, %s75
      %p84 = scmp.eq.s32.totalorder %s22, 0
      %p85 = por %p83, %p84
      %p86 = scmp.ne.s32.totalorder %s74, %s75
      %p87 = scmp.eq.s32.totalorder %s23, 1
      %p88 = por %p86, %p87
      %p90 = scmp.ne.s32.totalorder %s75, %s89
      %p91 = scmp.eq.s32.totalorder %s23, 0
      %p92 = por %p90, %p91
      %s94 = sadd.s32 %s93, 1
      %p97 = scmp.eq.s32.totalorder %s17, 1
      %p98 = scmp.ne.s32.totalorder %s93, %s95
      %p99 = scmp.eq.s32.totalorder %s17, 0
      %p100 = por %p98, %p99
      %p101 = scmp.ne.s32.totalorder %s93, %s95
      %p102 = scmp.eq.s32.totalorder %s22, 1
      %p103 = por %p101, %p102
      %p104 = scmp.ne.s32.totalorder %s95, %s96
      %p105 = scmp.eq.s32.totalorder %s22, 0
      %p106 = por %p104, %p105
      %p107 = scmp.ne.s32.totalorder %s95, %s96
      %p108 = scmp.eq.s32.totalorder %s23, 1
      %p109 = por %p107, %p108
      %p111 = scmp.ne.s32.totalorder %s96, %s110
      %p112 = scmp.eq.s32.totalorder %s23, 0
      %p113 = por %p111, %p112
      %s114 = ssub.s32 %s17, %s24
      %p115 = scmp.eq.s32.totalorder %s114, 0
      %s117 = sadd.s32 %s116, 1
      %s118 = scalar_select %p115, %s116, %s117
      %p121 = pneg %p115
      %p122 = scmp.eq.s32.totalorder %s17, 1
      %p123 = por %p121, %p122
      %p124 = scmp.ne.s32.totalorder %s116, %s119
      %p125 = scmp.eq.s32.totalorder %s17, 0
      %p126 = por %p124, %p125
      %p127 = scmp.ne.s32.totalorder %s116, %s119
      %p128 = scmp.eq.s32.totalorder %s22, 1
      %p129 = por %p127, %p128
      %p130 = scmp.ne.s32.totalorder %s119, %s120
      %p131 = scmp.eq.s32.totalorder %s22, 0
      %p132 = por %p130, %p131
      %p133 = scmp.ne.s32.totalorder %s119, %s120
      %p134 = scmp.eq.s32.totalorder %s23, 1
      %p135 = por %p133, %p134
      %p137 = scmp.ne.s32.totalorder %s120, %s136
      %p138 = scmp.eq.s32.totalorder %s23, 0
      %p139 = por %p137, %p138
      %p140 = scmp.le.s32.totalorder 1, %s17
      %p141 = scmp.lt.s32.totalorder %s17, 3
      %p142 = pnand %p140, %p141
      %p143 = pneg %p142
      // Predicated region
      $region9: #{tpu_custom_call.1} parent=5 // pred_check
        _
      $region10: #{tpu_custom_call.1} parent=5 // pred_check_branch
        %145 = sbr.rel (%p142) target = $region12
      $region11: #{tpu_custom_call.1} parent=5 // pred_region
        %s146 = ssub.s32 %s17, 1
        // Predicated region
        $region13: #{tpu_custom_call.1} parent=11 // pred_check
          %p147 = pneg %p64
        $region14: #{tpu_custom_call.1} parent=11 // pred_check_branch
          %149 = sbr.rel (%p147) target = $region16
        $region15: #{tpu_custom_call.1} parent=11 // pred_region
          %s151 = ssub.s32 2048, 2048
          %152 = vsyncadd [#allocation6], %s151
          %s153 = sshll.u32 [#allocation5], 4
          %s154 = int_to_ptr.vmem [resolvable:$true] %s153
          %159 = dma.hbm_to_vmem [thread:$0]  %s1, 2048, %s154, [#allocation6], 128, 128, 8
        $region16: #{tpu_custom_call.1} parent=11 // pred_fallthru
          _
        // Predicated region
        $region17: #{tpu_custom_call.1} parent=11 // pred_check
          %p160 = pneg %p85
        $region18: #{tpu_custom_call.1} parent=11 // pred_check_branch
          %162 = sbr.rel (%p160) target = $region20
        $region19: #{tpu_custom_call.1} parent=11 // pred_region
          _
        $region20: #{tpu_custom_call.1} parent=11 // pred_fallthru
          _
        // Predicated region
        $region21: #{tpu_custom_call.1} parent=11 // pred_check
          %p163 = pneg %p106
        $region22: #{tpu_custom_call.1} parent=11 // pred_check_branch
          %165 = sbr.rel (%p163) target = $region24
        $region23: #{tpu_custom_call.1} parent=11 // pred_region
          %s167 = ssub.s32 2048, 2048
          %168 = vsyncadd [#allocation6], %s167
          %s169 = sshll.u32 [#allocation7], 4
          %s170 = int_to_ptr.vmem [resolvable:$true] %s169
          %175 = dma.hbm_to_vmem [thread:$0]  %s3, 2048, %s170, [#allocation6], 128, 128, 8
        $region24: #{tpu_custom_call.1} parent=11 // pred_fallthru
          _
      $region12: #{tpu_custom_call.1} parent=5 // pred_fallthru
        _
      %p176 = scmp.lt.s32.totalorder %s17, 2
      // Predicated region
      $region25: #{tpu_custom_call.1} parent=5 // pred_check
        %p177 = pneg %p176
      $region26: #{tpu_custom_call.1} parent=5 // pred_check_branch
        %179 = sbr.rel (%p177) target = $region28
      $region27: #{tpu_custom_call.1} parent=5 // pred_region
        // Predicated region
        $region29: #{tpu_custom_call.1} parent=27 // pred_check
          %p180 = pneg %p37
        $region30: #{tpu_custom_call.1} parent=27 // pred_check_branch
          %182 = sbr.rel (%p180) target = $region32
        $region31: #{tpu_custom_call.1} parent=27 // pred_region
          %s183 = sand.u32 %s27, 1
          %s184 = scalar_lea.sflag [#allocation3], %s183
          %s185 = sand.u32 %s27, 1
          %s186 = smul.addr %s185, 8
          %s187 = scalar_lea.vmem [#allocation2], %s186
          %s189 = ssub.s32 128, 128
          %190 = vsyncadd %s184, %s189
          %s191 = smul.addr %s17, 128
          %s192 = scalar_lea.hbm %s0, %s191
          %s194 = sshll.u32 %s187, 4
          %s195 = int_to_ptr.vmem [resolvable:$true] %s194
          %197 = dma.hbm_to_vmem [thread:$0]  %s192, 128, %s195, %s184
        $region32: #{tpu_custom_call.1} parent=27 // pred_fallthru
          _
      $region28: #{tpu_custom_call.1} parent=5 // pred_fallthru
        _
      %p198 = scmp.le.s32.totalorder 1, %s17
      %p199 = scmp.lt.s32.totalorder %s17, 3
      %p200 = pnand %p198, %p199
      %p201 = pneg %p200
      // Predicated region
      $region33: #{tpu_custom_call.1} parent=5 // pred_check
        _
      $region34: #{tpu_custom_call.1} parent=5 // pred_check_branch
        %203 = sbr.rel (%p200) target = $region36
      $region35: #{tpu_custom_call.1} parent=5 // pred_region
        %s204 = ssub.s32 %s17, 1
        %s205 = sand.u32 %s30, 1
        %s206 = scalar_lea.sflag [#allocation3], %s205
        %s207 = sand.u32 %s30, 1
        %s208 = smul.addr %s207, 8
        %s209 = scalar_lea.vmem [#allocation2], %s208
        // Predicated region
        $region37: #{tpu_custom_call.1} parent=35 // pred_check
          %p210 = pneg %p43
        $region38: #{tpu_custom_call.1} parent=35 // pred_check_branch
          %212 = sbr.rel (%p210) target = $region40
        $region39: #{tpu_custom_call.1} parent=35 // pred_region
          %213 = dma.done %s206, 128
        $region40: #{tpu_custom_call.1} parent=35 // pred_fallthru
          _
        // Predicated region
        $region41: #{tpu_custom_call.1} parent=35 // pred_check
          %p214 = pneg %p64
        $region42: #{tpu_custom_call.1} parent=35 // pred_check_branch
          %216 = sbr.rel (%p214) target = $region44
        $region43: #{tpu_custom_call.1} parent=35 // pred_region
          %217 = dma.done [#allocation6], 2048
        $region44: #{tpu_custom_call.1} parent=35 // pred_fallthru
          _
        // Predicated region
        $region45: #{tpu_custom_call.1} parent=35 // pred_check
          %p218 = pneg %p106
        $region46: #{tpu_custom_call.1} parent=35 // pred_check_branch
          %220 = sbr.rel (%p218) target = $region48
        $region47: #{tpu_custom_call.1} parent=35 // pred_region
          %221 = dma.done [#allocation6], 2048
        $region48: #{tpu_custom_call.1} parent=35 // pred_fallthru
          _
        %s222 = sand.u32 %s30, 1
        %s223 = scalar_lea.sflag [#allocation3], %s222
        %s224 = sand.u32 %s30, 1
        %s225 = smul.addr %s224, 8
        %s226 = scalar_lea.vmem [#allocation2], %s225
        %p227 = pneg %p43
        %p228 = pneg %p40
        %p229 = pneg %p64
        %p230 = pneg %p61
        %p231 = pneg %p85
        %p232 = pneg %p82
        %p233 = pneg %p106
        %p234 = pneg %p103
        %p235 = pneg %p132
        %p236 = pneg %p129
        %s237 = sand.u32 %s119, 1
        %s238 = scalar_lea.sflag [#allocation4], %s237
        %s239 = sand.u32 %s119, 1
        %s240 = smul.addr %s239, 8
        %s241 = scalar_lea.vmem [#allocation8], %s240
        %v242 = vld [vmem:[%s209] sm:$0xff]
        %v243 = vld [vmem:[#allocation5] sm:$0xff]
        %v244 = vld [vmem:[#allocation5 + $0x8] sm:$0xff]
        %v245 = vld [vmem:[#allocation5 + $0x10] sm:$0xff]
        %v246 = vld [vmem:[#allocation5 + $0x18] sm:$0xff]
        %v247 = vld [vmem:[#allocation5 + $0x20] sm:$0xff]
        %v248 = vld [vmem:[#allocation5 + $0x28] sm:$0xff]
        %v249 = vld [vmem:[#allocation5 + $0x30] sm:$0xff]
        %v250 = vld [vmem:[#allocation5 + $0x38] sm:$0xff]
        %v251 = vld [vmem:[#allocation5 + $0x40] sm:$0xff]
        %v252 = vld [vmem:[#allocation5 + $0x48] sm:$0xff]
        %v253 = vld [vmem:[#allocation5 + $0x50] sm:$0xff]
        %v254 = vld [vmem:[#allocation5 + $0x58] sm:$0xff]
        %v255 = vld [vmem:[#allocation5 + $0x60] sm:$0xff]
        %v256 = vld [vmem:[#allocation5 + $0x68] sm:$0xff]
        %v257 = vld [vmem:[#allocation5 + $0x70] sm:$0xff]
        %v258 = vld [vmem:[#allocation5 + $0x78] sm:$0xff]
        %v259 = vld [vmem:[%s2] sm:$0x1]
        %v261 = vlaneseq
        %v262 = vshrl.u32 %v261, 7
        %v263 = vsub.s32 0, %v262
        %v264 = vrot.slane %v259, %v263
        %266 = vmatprep.subr.mxu0 0.0
        %267 = vmatpush1.msra.mxu0 %v258
        %268 = vmatprep.subr.mxu0 0.0
        %269 = vmatpush1.msra.mxu0 %v257
        %270 = vmatprep.subr.mxu0 0.0
        %271 = vmatpush1.msra.mxu0 %v256
        %272 = vmatprep.subr.mxu0 0.0
        %273 = vmatpush1.msra.mxu0 %v255
        %274 = vmatprep.subr.mxu0 0.0
        %275 = vmatpush1.msra.mxu0 %v254
        %276 = vmatprep.subr.mxu0 0.0
        %277 = vmatpush1.msra.mxu0 %v253
        %278 = vmatprep.subr.mxu0 0.0
        %279 = vmatpush1.msra.mxu0 %v252
        %280 = vmatprep.subr.mxu0 0.0
        %281 = vmatpush1.msra.mxu0 %v251
        %282 = vmatprep.subr.mxu0 0.0
        %283 = vmatpush1.msra.mxu0 %v250
        %284 = vmatprep.subr.mxu0 0.0
        %285 = vmatpush1.msra.mxu0 %v249
        %286 = vmatprep.subr.mxu0 0.0
        %287 = vmatpush1.msra.mxu0 %v248
        %288 = vmatprep.subr.mxu0 0.0
        %289 = vmatpush1.msra.mxu0 %v247
        %290 = vmatprep.subr.mxu0 0.0
        %291 = vmatpush1.msra.mxu0 %v246
        %292 = vmatprep.subr.mxu0 0.0
        %293 = vmatpush1.msra.mxu0 %v245
        %294 = vmatprep.subr.mxu0 0.0
        %295 = vmatpush1.msra.mxu0 %v244
        %296 = vmatprep.subr.mxu0 0.0
        %297 = vmatpush1.msra.mxu0 %v243
        %298 = vmatprep.subr.mxu0 0.0
        %299 = vmatpush2.msra.mxu0 0.0
        %300 = vmatprep.subr.mxu0 0.0
        %301 = vmatpush2.msra.mxu0 0.0
        %302 = vmatprep.subr.mxu0 0.0
        %303 = vmatpush2.msra.mxu0 0.0
        %304 = vmatprep.subr.mxu0 0.0
        %305 = vmatpush2.msra.mxu0 0.0
        %306 = vmatprep.subr.mxu0 0.0
        %307 = vmatpush2.msra.mxu0 0.0
        %308 = vmatprep.subr.mxu0 0.0
        %309 = vmatpush2.msra.mxu0 0.0
        %310 = vmatprep.subr.mxu0 0.0
        %311 = vmatpush2.msra.mxu0 0.0
        %312 = vmatprep.subr.mxu0 0.0
        %313 = vmatpush2.msra.mxu0 0.0
        %314 = vmatprep.subr.mxu0 0.0
        %315 = vmatpush2.msra.mxu0 0.0
        %316 = vmatprep.subr.mxu0 0.0
        %317 = vmatpush2.msra.mxu0 0.0
        %318 = vmatprep.subr.mxu0 0.0
        %319 = vmatpush2.msra.mxu0 0.0
        %320 = vmatprep.subr.mxu0 0.0
        %321 = vmatpush2.msra.mxu0 0.0
        %322 = vmatprep.subr.mxu0 0.0
        %323 = vmatpush2.msra.mxu0 0.0
        %324 = vmatprep.subr.mxu0 0.0
        %325 = vmatpush2.msra.mxu0 0.0
        %326 = vmatprep.subr.mxu0 0.0
        %327 = vmatpush2.msra.mxu0 0.0
        %328 = vmatprep.subr.mxu0 0.0
        %329 = vmatpush2.msra.mxu0 0.0
        %330 = vmatprep.mubr.f32.mxu0 0.0
        %331 = vmatmul.mubr.f32.gmra.mxu0 %v242
        %v332 = vpop.f32.mrf.mxu0
        %v333 = vadd.f32 %v264, %v332
        %v334 = vpop.f32.mrf.mxu0
        %335 = vdwg.mxu0
        %v336 = vmax.f32 %v333, 0.0
        %v337 = vld [vmem:[#allocation7] sm:$0xff]
        %v338 = vld [vmem:[#allocation7 + $0x8] sm:$0xff]
        %v339 = vld [vmem:[#allocation7 + $0x10] sm:$0xff]
        %v340 = vld [vmem:[#allocation7 + $0x18] sm:$0xff]
        %v341 = vld [vmem:[#allocation7 + $0x20] sm:$0xff]
        %v342 = vld [vmem:[#allocation7 + $0x28] sm:$0xff]
        %v343 = vld [vmem:[#allocation7 + $0x30] sm:$0xff]
        %v344 = vld [vmem:[#allocation7 + $0x38] sm:$0xff]
        %v345 = vld [vmem:[#allocation7 + $0x40] sm:$0xff]
        %v346 = vld [vmem:[#allocation7 + $0x48] sm:$0xff]
        %v347 = vld [vmem:[#allocation7 + $0x50] sm:$0xff]
        %v348 = vld [vmem:[#allocation7 + $0x58] sm:$0xff]
        %v349 = vld [vmem:[#allocation7 + $0x60] sm:$0xff]
        %v350 = vld [vmem:[#allocation7 + $0x68] sm:$0xff]
        %v351 = vld [vmem:[#allocation7 + $0x70] sm:$0xff]
        %v352 = vld [vmem:[#allocation7 + $0x78] sm:$0xff]
        %353 = vmatprep.subr.mxu0 0.0
        %354 = vmatpush1.msra.mxu0 %v352
        %355 = vmatprep.subr.mxu0 0.0
        %356 = vmatpush1.msra.mxu0 %v351
        %357 = vmatprep.subr.mxu0 0.0
        %358 = vmatpush1.msra.mxu0 %v350
        %359 = vmatprep.subr.mxu0 0.0
        %360 = vmatpush1.msra.mxu0 %v349
        %361 = vmatprep.subr.mxu0 0.0
        %362 = vmatpush1.msra.mxu0 %v348
        %363 = vmatprep.subr.mxu0 0.0
        %364 = vmatpush1.msra.mxu0 %v347
        %365 = vmatprep.subr.mxu0 0.0
        %366 = vmatpush1.msra.mxu0 %v346
        %367 = vmatprep.subr.mxu0 0.0
        %368 = vmatpush1.msra.mxu0 %v345
        %369 = vmatprep.subr.mxu0 0.0
        %370 = vmatpush1.msra.mxu0 %v344
        %371 = vmatprep.subr.mxu0 0.0
        %372 = vmatpush1.msra.mxu0 %v343
        %373 = vmatprep.subr.mxu0 0.0
        %374 = vmatpush1.msra.mxu0 %v342
        %375 = vmatprep.subr.mxu0 0.0
        %376 = vmatpush1.msra.mxu0 %v341
        %377 = vmatprep.subr.mxu0 0.0
        %378 = vmatpush1.msra.mxu0 %v340
        %379 = vmatprep.subr.mxu0 0.0
        %380 = vmatpush1.msra.mxu0 %v339
        %381 = vmatprep.subr.mxu0 0.0
        %382 = vmatpush1.msra.mxu0 %v338
        %383 = vmatprep.subr.mxu0 0.0
        %384 = vmatpush1.msra.mxu0 %v337
        %385 = vmatprep.subr.mxu0 0.0
        %386 = vmatpush2.msra.mxu0 0.0
        %387 = vmatprep.subr.mxu0 0.0
        %388 = vmatpush2.msra.mxu0 0.0
        %389 = vmatprep.subr.mxu0 0.0
        %390 = vmatpush2.msra.mxu0 0.0
        %391 = vmatprep.subr.mxu0 0.0
        %392 = vmatpush2.msra.mxu0 0.0
        %393 = vmatprep.subr.mxu0 0.0
        %394 = vmatpush2.msra.mxu0 0.0
        %395 = vmatprep.subr.mxu0 0.0
        %396 = vmatpush2.msra.mxu0 0.0
        %397 = vmatprep.subr.mxu0 0.0
        %398 = vmatpush2.msra.mxu0 0.0
        %399 = vmatprep.subr.mxu0 0.0
        %400 = vmatpush2.msra.mxu0 0.0
        %401 = vmatprep.subr.mxu0 0.0
        %402 = vmatpush2.msra.mxu0 0.0
        %403 = vmatprep.subr.mxu0 0.0
        %404 = vmatpush2.msra.mxu0 0.0
        %405 = vmatprep.subr.mxu0 0.0
        %406 = vmatpush2.msra.mxu0 0.0
        %407 = vmatprep.subr.mxu0 0.0
        %408 = vmatpush2.msra.mxu0 0.0
        %409 = vmatprep.subr.mxu0 0.0
        %410 = vmatpush2.msra.mxu0 0.0
        %411 = vmatprep.subr.mxu0 0.0
        %412 = vmatpush2.msra.mxu0 0.0
        %413 = vmatprep.subr.mxu0 0.0
        %414 = vmatpush2.msra.mxu0 0.0
        %415 = vmatprep.subr.mxu0 0.0
        %416 = vmatpush2.msra.mxu0 0.0
        %417 = vmatprep.mubr.f32.mxu0 0.0
        %418 = vmatmul.mubr.f32.gmra.mxu0 %v336
        %v419 = vpop.f32.mrf.mxu0
        %v420 = vadd.f32 0.0, %v419
        %v421 = vpop.f32.mrf.mxu0
        %422 = vdwg.mxu0
        %v423 = vrot.slane %v420, 4
        %v424 = vmax.f32 %v420, %v423
        %v425 = vrot.slane %v424, 2
        %v426 = vmax.f32 %v424, %v425
        %v427 = vrot.slane %v426, 1
        %v428 = vmax.f32 %v426, %v427
        %v429 = vsub.f32 %v420, %v428
        %v430 = vmul.f32 %v429, 1.442695
        %v431 = vpow.pop %v430
        %v432 = vrot.slane %v431, 4
        %v433 = vadd.f32 %v431, %v432
        %v434 = vrot.slane %v433, 2
        %v435 = vadd.f32 %v433, %v434
        %v436 = vrot.slane %v435, 1
        %v437 = vadd.f32 %v435, %v436
        %v438 = vrcp.pop %v437
        %v439 = vmul.f32 %v431, %v438
        %v440 = vmul.f32 %v242, %v439
        %441 = vst [vmem:[%s241] sm:$0xff] %v440
        %s442 = sand.u32 %s119, 1
        %s443 = scalar_lea.sflag [#allocation4], %s442
        %s444 = sand.u32 %s119, 1
        %s445 = smul.addr %s444, 8
        %s446 = scalar_lea.vmem [#allocation8], %s445
        // Predicated region
        $region49: #{tpu_custom_call.1} parent=35 // pred_check
          %p447 = pneg %p129
        $region50: #{tpu_custom_call.1} parent=35 // pred_check_branch
          %449 = sbr.rel (%p447) target = $region52
        $region51: #{tpu_custom_call.1} parent=35 // pred_region
          %s451 = ssub.s32 128, 128
          %452 = vsyncadd %s443, %s451
          %s453 = smul.addr %s22, 128
          %s454 = scalar_lea.hbm %s4, %s453
          %s456 = sshll.u32 %s446, 4
          %s457 = int_to_ptr.vmem [resolvable:$true] %s456
          %459 = dma.vmem_to_hbm [thread:$0]  %s457, 128, %s454, %s443
        $region52: #{tpu_custom_call.1} parent=35 // pred_fallthru
          _
      $region36: #{tpu_custom_call.1} parent=5 // pred_fallthru
        _
      %p460 = scmp.le.s32.totalorder 2, %s17
      // Predicated region
      $region53: #{tpu_custom_call.1} parent=5 // pred_check
        %p461 = pneg %p460
      $region54: #{tpu_custom_call.1} parent=5 // pred_check_branch
        %463 = sbr.rel (%p461) target = $region56
      $region55: #{tpu_custom_call.1} parent=5 // pred_region
        %s464 = ssub.s32 %s17, 2
        // Predicated region
        $region57: #{tpu_custom_call.1} parent=55 // pred_check
          %p465 = pneg %p135
        $region58: #{tpu_custom_call.1} parent=55 // pred_check_branch
          %467 = sbr.rel (%p465) target = $region60
        $region59: #{tpu_custom_call.1} parent=55 // pred_region
          %s468 = sand.u32 %s120, 1
          %s469 = scalar_lea.sflag [#allocation4], %s468
          %s470 = sand.u32 %s120, 1
          %s471 = smul.addr %s470, 8
          %s472 = scalar_lea.vmem [#allocation8], %s471
          %473 = dma.done %s469, 128
        $region60: #{tpu_custom_call.1} parent=55 // pred_fallthru
          _
      $region56: #{tpu_custom_call.1} parent=5 // pred_fallthru
        _
    $region6: #{tpu_custom_call.1} parent=1 // loop_footer
      %s21 = sadd.s32 1, %s17
    $region7: #{tpu_custom_call.1} parent=1 // loop_footer_branch
      %16 = sbr.rel target = $region3
    $region8: #{tpu_custom_call.1} parent=1 // loop_exit
      _
    %474 = vsyncpa [#allocation3], 1
    %s475 = scalar_lea.sflag [#allocation3], 1
    %476 = vsyncpa %s475, 1
    %477 = vsyncpa [#allocation6], 1
    %478 = vsyncpa [#allocation4], 1
    %s479 = scalar_lea.sflag [#allocation4], 1
    %480 = vsyncpa %s479, 1

</llo_original>
